<compile_context>
chip_gen: v6e
topology: v6e:2x2x1
jax: 0.10.0
libtpu: 0.0.40
codegen_flags: <defaults>
</compile_context>

<pallas_src>
import functools

import jax
import jax.numpy as jnp
from jax.experimental import pallas as pl
from jax.experimental.pallas import tpu as pltpu


def _round_up(v, m):
    return ((v + m - 1) // m) * m


def _fused_split_mlp_kernel(split_index, dims, w_ref, v_ref, x_ref, o_ref):
    D, H, O = dims
    L = o_ref.shape[-1]                                  # lane-dense width (>=128)

    x = x_ref[...]                                       # (TILE_B, D) f32

    # Static row offsets into the packed weight slab (all L columns wide).
    w1 = w_ref[0:D, :]                                   # (D, L)
    w2 = w_ref[D:D + L, :]                               # (L, L) block-diagonal
    w3 = w_ref[D + L:D + 2 * L, :]                       # (L, L) both heads -> cols 0:O
    cdt = w1.dtype                                       # compute dtype (bf16 or f32)

    b1 = v_ref[0:1, :]                                   # (1, L) f32
    b2 = v_ref[1:2, :]
    b3a = v_ref[2:3, :]                                  # mlp1 output bias (cols 0:O)
    b3b = v_ref[3:4, :]                                  # mlp2 output bias (cols 0:O)
    m1 = v_ref[4:5, :]                                   # 1.0 on lanes [0:H)
    m2 = v_ref[5:6, :]                                   # 1.0 on lanes [H:2H)

    # split mask computed once per block (exact == 1.0 test, matching the reference).
    split = (x[:, split_index:split_index + 1] == jnp.float32(1.0)).astype(jnp.float32)

    # Layers 1 & 2: MXU in compute dtype, f32 accumulate; bias/ReLU in f32 (v5e-safe).
    h = jnp.maximum(jnp.dot(x.astype(cdt), w1, preferred_element_type=jnp.float32) + b1, 0.0)
    h = jnp.maximum(jnp.dot(h.astype(cdt), w2, preferred_element_type=jnp.float32) + b2, 0.0)

    # Fold the split blend into the last matmul: keep only the selected MLP's half of h.
    mask = split * m1 + (1.0 - split) * m2               # (TILE_B, L)
    y = jnp.dot((h * mask).astype(cdt), w3, preferred_element_type=jnp.float32)
    bias = split * b3a + (1.0 - split) * b3b             # blended output bias (cols 0:O)
    o_ref[...] = y + bias                                # lanes >= O are exactly zero


def pack_params(params1, params2, compute_dtype=jnp.bfloat16):
    """Pack the two 3-layer MLPs into two resident slabs (call ONCE, outside the hot path).

    Returns:
      w_slab: (D + 2L, L) in `compute_dtype`  -> [W1 ; W2 ; W3]
      v_slab: (6, L) float32                  -> [B1 ; B2 ; B3a ; B3b ; MASK1 ; MASK2]
      dims:   (D, H, O) static python ints
    """
    (w1a, b1a), (w2a, b2a), (w3a, b3a) = params1
    (w1b, b1b), (w2b, b2b), (w3b, b3b) = params2
    D, H = w1a.shape
    O = w3a.shape[1]
    L = max(128, _round_up(2 * H, 128))                  # lane-dense width
    assert O <= L, "output dim must fit within the lane-padded width"

    f32 = jnp.float32
    W1 = jnp.zeros((D, L), f32).at[:, :H].set(w1a).at[:, H:2 * H].set(w1b)
    W2 = jnp.zeros((L, L), f32).at[:H, :H].set(w2a).at[H:2 * H, H:2 * H].set(w2b)
    # Fold-blend layout: BOTH heads write columns 0:O (the in-kernel mask picks one).
    W3 = jnp.zeros((L, L), f32).at[:H, :O].set(w3a).at[H:2 * H, :O].set(w3b)
    w_slab = jnp.concatenate([W1, W2, W3], axis=0).astype(compute_dtype)

    B1 = jnp.zeros((1, L), f32).at[:, :H].set(b1a).at[:, H:2 * H].set(b1b)
    B2 = jnp.zeros((1, L), f32).at[:, :H].set(b2a).at[:, H:2 * H].set(b2b)
    B3a = jnp.zeros((1, L), f32).at[:, :O].set(b3a)
    B3b = jnp.zeros((1, L), f32).at[:, :O].set(b3b)
    M1 = jnp.zeros((1, L), f32).at[:, :H].set(1.0)
    M2 = jnp.zeros((1, L), f32).at[:, H:2 * H].set(1.0)
    v_slab = jnp.concatenate([B1, B2, B3a, B3b, M1, M2], axis=0)

    return w_slab, v_slab, (D, H, O)


@functools.partial(jax.jit, static_argnames=("dims", "split_index"))
def split_model_forward(x, w_slab, v_slab, *, dims, split_index=-1):
    """x: (B, D) or (D,). w_slab/v_slab from pack_params (pre-packed, resident)."""
    D, H, O = dims
    if x.ndim == 1:
        x = x[None, :]
    x = x.astype(jnp.float32)
    assert x.shape[1] == D
    si = split_index % D                                  # non-negative static lane index
    L = w_slab.shape[1]

    B = x.shape[0]
    if B >= 1024:
        # Keep >= 2 tiles so v7x can shard the batch across both TensorCores;
        # cap at 2048 rows (per-tile VMEM ~2 MiB, well under all limits).
        TILE_B = min(2048, _round_up(pl.cdiv(B, 2), 8))
    else:
        TILE_B = _round_up(max(B, 1), 8)                  # sublane-aligned single tile
    B_pad = pl.cdiv(B, TILE_B) * TILE_B
    if B_pad != B:
        # Padded rows read feature 0.0 != 1.0 -> mlp2 path; they are sliced off below.
        x = jnp.pad(x, ((0, B_pad - B), (0, 0)))

    flops = 2 * B_pad * (D * L + L * L + L * L)
    bytes_accessed = (B_pad * D * 4 + w_slab.size * jnp.dtype(w_slab.dtype).itemsize
                      + v_slab.size * 4 + B_pad * L * 4)

    kernel = functools.partial(_fused_split_mlp_kernel, si, (D, H, O))
    out = pl.pallas_call(
        kernel,
        out_shape=jax.ShapeDtypeStruct((B_pad, L), jnp.float32),
        grid=(B_pad // TILE_B,),
        in_specs=[
            # TODO(synk): add pipeline_mode=pl.Buffered(1) on the two grid-invariant
            # param slabs once single-buffered resident operands are supported here.
            pl.BlockSpec(w_slab.shape, lambda i: (0, 0)),   # weights: resident
            pl.BlockSpec(v_slab.shape, lambda i: (0, 0)),   # biases/masks: resident
            pl.BlockSpec((TILE_B, D), lambda i: (i, 0)),    # x: batch tile
        ],
        out_specs=pl.BlockSpec((TILE_B, L), lambda i: (i, 0)),  # lane-dense store
        compiler_params=pltpu.CompilerParams(dimension_semantics=("parallel",)),
        cost_estimate=pl.CostEstimate(flops=flops, transcendentals=0,
                                      bytes_accessed=bytes_accessed),
    )(w_slab, v_slab, x)
    return out[:B, :O]


def init_mlp_params(key, sizes):
    """Deterministic PyTorch-Linear-style init: U(-1/sqrt(fan_in), 1/sqrt(fan_in))."""
    params = []
    for j in range(len(sizes) - 1):
        fan_in, fan_out = sizes[j], sizes[j + 1]
        key, kw, kb = jax.random.split(key, 3)
        bound = 1.0 / jnp.sqrt(jnp.float32(fan_in))
        w = jax.random.uniform(kw, (fan_in, fan_out), jnp.float32, -bound, bound)
        b = jax.random.uniform(kb, (1, fan_out), jnp.float32, -bound, bound)
        params.append((w, b))
    return params, key


def reference_forward(x, params1, params2, split_index=-1):
    if x.ndim == 1:
        x = x[None, :]

    def mlp_fwd(h, params):
        for i, (w, b) in enumerate(params):
            h = h @ w + b
            if i < len(params) - 1:
                h = jnp.maximum(h, 0.0)
        return h

    split = (x[:, split_index] == 1.0)[:, None].astype(jnp.float32)
    return split * mlp_fwd(x, params1) + (1.0 - split) * mlp_fwd(x, params2)


if __name__ == "__main__":
    # sizes matches the TD3 mlp constructor: [obs_dim, hidden, hidden, out_dim]
    sizes = [8, 32, 32, 4]
    split_index = -1

    key = jax.random.PRNGKey(0)
    params1, key = init_mlp_params(key, sizes)
    params2, key = init_mlp_params(key, sizes)

    key, kx = jax.random.split(key)
    B = 2
    x = jax.random.normal(kx, (B, sizes[0]), jnp.float32)
    # exercise both branches of the split: row 0 takes mlp1, row 1 takes mlp2
    x = x.at[0, split_index].set(1.0)
    x = x.at[1, split_index].set(0.0)

    ref = reference_forward(x, params1, params2, split_index)

    # --- f32-operand path: exact structural check vs the f32 reference ---
    w32, v32, dims = pack_params(params1, params2, compute_dtype=jnp.float32)
    out32 = split_model_forward(x, w32, v32, dims=dims, split_index=split_index)
    out32 = jax.block_until_ready(out32)
    assert out32.shape == ref.shape == (B, sizes[-1])
    assert jnp.allclose(out32, ref, atol=1e-5, rtol=1e-5), (out32, ref)

    # --- default bf16 MXU-operand path (f32 accumulate): relaxed tolerance ---
    wbf, vbf, dims = pack_params(params1, params2)  # bf16 by default
    outbf = split_model_forward(x, wbf, vbf, dims=dims, split_index=split_index)
    outbf = jax.block_until_ready(outbf)
    assert outbf.shape == ref.shape
    assert jnp.allclose(outbf, ref, atol=5e-2, rtol=5e-2), (outbf, ref)

    # --- 1-D input path (unsqueeze semantics) ---
    out1d = split_model_forward(x[0], wbf, vbf, dims=dims, split_index=split_index)
    out1d = jax.block_until_ready(out1d)
    assert jnp.allclose(out1d, ref[0:1], atol=5e-2, rtol=5e-2), (out1d, ref[0:1])

    print("KERNEL_OK")
</pallas_src>

<mosaic_0001>
module attributes {stable_mosaic.version = 11 : i64} {
  func.func @_fused_split_mlp_kernel(%arg0: i32, %arg1: memref<264x128xf32, #tpu.memory_space<vmem>>, %arg2: memref<6x128xf32, #tpu.memory_space<vmem>>, %arg3: memref<8x8xf32, #tpu.memory_space<vmem>>, %arg4: memref<8x128xf32, #tpu.memory_space<vmem>>) attributes {dimension_semantics = [#tpu.dimension_semantics<parallel>], iteration_bounds = array<i64: 1>, scalar_prefetch = 0 : i64, scratch_operands = 0 : i64, tpu.core_type = #tpu.core_type<tc>, window_params = [{pipeline_mode = #tpu.pipeline_mode<synchronous>, transform_indices = @transform_0, window_bounds = array<i64: 264, 128>}, {pipeline_mode = #tpu.pipeline_mode<synchronous>, transform_indices = @transform_1, window_bounds = array<i64: 6, 128>}, {transform_indices = @transform_2, window_bounds = array<i64: 8, 8>}, {transform_indices = @transform_3, window_bounds = array<i64: 8, 128>}]} {
    %c0 = arith.constant 0 : index
    %c0_0 = arith.constant 0 : index
    %0 = vector.load %arg3[%c0, %c0_0] : memref<8x8xf32, #tpu.memory_space<vmem>>, vector<8x8xf32>
    %c0_1 = arith.constant 0 : index
    %c0_2 = arith.constant 0 : index
    %1 = vector.load %arg1[%c0_1, %c0_2] : memref<264x128xf32, #tpu.memory_space<vmem>>, vector<8x128xf32>
    %c8 = arith.constant 8 : index
    %c0_3 = arith.constant 0 : index
    %2 = vector.load %arg1[%c8, %c0_3] : memref<264x128xf32, #tpu.memory_space<vmem>>, vector<128x128xf32>
    %c136 = arith.constant 136 : index
    %c0_4 = arith.constant 0 : index
    %3 = vector.load %arg1[%c136, %c0_4] : memref<264x128xf32, #tpu.memory_space<vmem>>, vector<128x128xf32>
    %c0_5 = arith.constant 0 : index
    %c0_6 = arith.constant 0 : index
    %4 = vector.load %arg2[%c0_5, %c0_6] : memref<6x128xf32, #tpu.memory_space<vmem>>, vector<1x128xf32>
    %c1 = arith.constant 1 : index
    %c0_7 = arith.constant 0 : index
    %5 = vector.load %arg2[%c1, %c0_7] : memref<6x128xf32, #tpu.memory_space<vmem>>, vector<1x128xf32>
    %c2 = arith.constant 2 : index
    %c0_8 = arith.constant 0 : index
    %6 = vector.load %arg2[%c2, %c0_8] : memref<6x128xf32, #tpu.memory_space<vmem>>, vector<1x128xf32>
    %c3 = arith.constant 3 : index
    %c0_9 = arith.constant 0 : index
    %7 = vector.load %arg2[%c3, %c0_9] : memref<6x128xf32, #tpu.memory_space<vmem>>, vector<1x128xf32>
    %c4 = arith.constant 4 : index
    %c0_10 = arith.constant 0 : index
    %8 = vector.load %arg2[%c4, %c0_10] : memref<6x128xf32, #tpu.memory_space<vmem>>, vector<1x128xf32>
    %c5 = arith.constant 5 : index
    %c0_11 = arith.constant 0 : index
    %9 = vector.load %arg2[%c5, %c0_11] : memref<6x128xf32, #tpu.memory_space<vmem>>, vector<1x128xf32>
    %10 = vector.extract_strided_slice %0 {offsets = [0, 7], sizes = [8, 1], strides = [1, 1]} : vector<8x8xf32> to vector<8x1xf32>
    %cst = arith.constant 1.000000e+00 : f32
    %11 = vector.broadcast %cst : f32 to vector<8x1xf32>
    %12 = arith.cmpf oeq, %10, %11 : vector<8x1xf32>
    %13 = arith.extui %12 : vector<8x1xi1> to vector<8x1xi32>
    %14 = arith.sitofp %13 : vector<8x1xi32> to vector<8x1xf32>
    %cst_12 = arith.constant dense<0.000000e+00> : vector<8x128xf32>
    %15 = tpu.matmul %0, %1, %cst_12 {dimension_numbers = #tpu.dot_dimension_numbers<[1], [0], [0], [1], [0, 0, 1, 1], [], []>} : vector<8x8xf32>, vector<8x128xf32>, vector<8x128xf32> -> vector<8x128xf32>
    %16 = vector.broadcast %4 : vector<1x128xf32> to vector<8x128xf32>
    %17 = arith.addf %15, %16 : vector<8x128xf32>
    %cst_13 = arith.constant 0.000000e+00 : f32
    %18 = vector.broadcast %cst_13 : f32 to vector<8x128xf32>
    %19 = arith.maximumf %17, %18 : vector<8x128xf32>
    %cst_14 = arith.constant dense<0.000000e+00> : vector<8x128xf32>
    %20 = tpu.matmul %19, %2, %cst_14 {dimension_numbers = #tpu.dot_dimension_numbers<[1], [0], [0], [1], [0, 0, 1, 1], [], []>} : vector<8x128xf32>, vector<128x128xf32>, vector<8x128xf32> -> vector<8x128xf32>
    %21 = vector.broadcast %5 : vector<1x128xf32> to vector<8x128xf32>
    %22 = arith.addf %20, %21 : vector<8x128xf32>
    %cst_15 = arith.constant 0.000000e+00 : f32
    %23 = vector.broadcast %cst_15 : f32 to vector<8x128xf32>
    %24 = arith.maximumf %22, %23 : vector<8x128xf32>
    %25 = vector.broadcast %14 : vector<8x1xf32> to vector<8x128xf32>
    %26 = vector.broadcast %8 : vector<1x128xf32> to vector<8x128xf32>
    %27 = arith.mulf %25, %26 : vector<8x128xf32>
    %cst_16 = arith.constant 1.000000e+00 : f32
    %28 = vector.broadcast %cst_16 : f32 to vector<8x1xf32>
    %29 = arith.subf %28, %14 : vector<8x1xf32>
    %30 = vector.broadcast %29 : vector<8x1xf32> to vector<8x128xf32>
    %31 = vector.broadcast %9 : vector<1x128xf32> to vector<8x128xf32>
    %32 = arith.mulf %30, %31 : vector<8x128xf32>
    %33 = arith.addf %27, %32 : vector<8x128xf32>
    %34 = arith.mulf %24, %33 : vector<8x128xf32>
    %cst_17 = arith.constant dense<0.000000e+00> : vector<8x128xf32>
    %35 = tpu.matmul %34, %3, %cst_17 {dimension_numbers = #tpu.dot_dimension_numbers<[1], [0], [0], [1], [0, 0, 1, 1], [], []>} : vector<8x128xf32>, vector<128x128xf32>, vector<8x128xf32> -> vector<8x128xf32>
    %36 = vector.broadcast %14 : vector<8x1xf32> to vector<8x128xf32>
    %37 = vector.broadcast %6 : vector<1x128xf32> to vector<8x128xf32>
    %38 = arith.mulf %36, %37 : vector<8x128xf32>
    %cst_18 = arith.constant 1.000000e+00 : f32
    %39 = vector.broadcast %cst_18 : f32 to vector<8x1xf32>
    %40 = arith.subf %39, %14 : vector<8x1xf32>
    %41 = vector.broadcast %40 : vector<8x1xf32> to vector<8x128xf32>
    %42 = vector.broadcast %7 : vector<1x128xf32> to vector<8x128xf32>
    %43 = arith.mulf %41, %42 : vector<8x128xf32>
    %44 = arith.addf %38, %43 : vector<8x128xf32>
    %45 = arith.addf %35, %44 : vector<8x128xf32>
    %c0_19 = arith.constant 0 : index
    %c0_20 = arith.constant 0 : index
    %46 = vector.load %arg4[%c0_19, %c0_20] : memref<8x128xf32, #tpu.memory_space<vmem>>, vector<8x128xf32>
    tpu.vector_store %arg4[%c0_19, %c0_20], %45 {strides = array<i32>} : memref<8x128xf32, #tpu.memory_space<vmem>>, vector<8x128xf32>,
    return
  }
  func.func @transform_0(%arg0: i32) -> (i32, i32) {
    %c0_i32 = arith.constant 0 : i32
    %c0_i32_0 = arith.constant 0 : i32
    %c0_i32_1 = arith.constant 0 : i32
    return %c0_i32, %c0_i32_0 : i32, i32
  }
  func.func @transform_1(%arg0: i32) -> (i32, i32) {
    %c0_i32 = arith.constant 0 : i32
    %c0_i32_0 = arith.constant 0 : i32
    %c0_i32_1 = arith.constant 0 : i32
    return %c0_i32, %c0_i32_0 : i32, i32
  }
  func.func @transform_2(%arg0: i32) -> (i32, i32) {
    %c0_i32 = arith.constant 0 : i32
    %c0_i32_0 = arith.constant 0 : i32
    return %arg0, %c0_i32 : i32, i32
  }
  func.func @transform_3(%arg0: i32) -> (i32, i32) {
    %c0_i32 = arith.constant 0 : i32
    %c0_i32_0 = arith.constant 0 : i32
    return %arg0, %c0_i32 : i32, i32
  }
}

</mosaic_0001>

<llo_original>
// kernel: split_model_forward.1
$region0: #{split_model_forward.1}
  #allocation0 [shape = 'u32[]', space=smem, size = 0x4, offset = 0x4, fixed_abs, tag = 'smem constant byte address 0x4 - core index']
  #allocation1 [shape = 'u32[144,128]{1,0:T(1,128)}', space=vmem, size = 0x12000, scoped, tag = 'internal scratch']
  %s0 = inlined_call_operand.hbm [shape: f32[264,128], index: 0, kind: input, shape index: {}]
  %s1 = inlined_call_operand.vmem [shape: f32[6,128], index: 1, kind: input, shape index: {}]
  %s2 = inlined_call_operand.vmem [shape: f32[8,8], index: 2, kind: input, shape index: {}]
  %s3 = inlined_call_operand.vmem [shape: f32[8,128], index: 3, kind: output, shape index: {}]
  %s4 = sld [smem:[#allocation0]]
  $region26: #{split_model_forward.1} parent=0
    _
  %s6 = ssub.s32 1, %s4
  %s7 = scalar_select 0, %s6, %s4
  $region1: #{split_model_forward.1} parent=0
    #allocation2 [shape = 'u8[135168]{0}', space=vmem, size = 0x21000, scoped, tag = 'input window, operand 0, single buffered']
    #allocation3 [shape = 's32[1]{0}', space=sflag, size = 0x4, scoped, tag = 'scoped memory for split_model_forward.1']
    %8 = vsyncpa [#allocation3], 0
    // Predicated region
    $region2: #{split_model_forward.1} parent=1 // pred_check
      _
    $region3: #{split_model_forward.1} parent=1 // pred_check_branch
      %10 = sbr.rel (0) target = $region5
    $region4: #{split_model_forward.1} parent=1 // pred_region
      %s12 = ssub.s32 4224, 4224
      %13 = vsyncadd [#allocation3], %s12
      %s14 = sshll.u32 [#allocation2], 4
      %s15 = int_to_ptr.vmem [resolvable:$true] %s14
      %20 = dma.hbm_to_vmem [thread:$0]  %s0, 4224, %s15, [#allocation3], 128, 128, 8
    $region5: #{split_model_forward.1} parent=1 // pred_fallthru
      _
    // Predicated region
    $region6: #{split_model_forward.1} parent=1 // pred_check
      _
    $region7: #{split_model_forward.1} parent=1 // pred_check_branch
      %22 = sbr.rel (0) target = $region9
    $region8: #{split_model_forward.1} parent=1 // pred_region
      _
    $region9: #{split_model_forward.1} parent=1 // pred_fallthru
      _
    // Predicated region
    $region10: #{split_model_forward.1} parent=1 // pred_check
      _
    $region11: #{split_model_forward.1} parent=1 // pred_check_branch
      %24 = sbr.rel (0) target = $region13
    $region12: #{split_model_forward.1} parent=1 // pred_region
      _
    $region13: #{split_model_forward.1} parent=1 // pred_fallthru
      _
    // Predicated region
    $region14: #{split_model_forward.1} parent=1 // pred_check
      _
    $region15: #{split_model_forward.1} parent=1 // pred_check_branch
      %26 = sbr.rel (0) target = $region17
    $region16: #{split_model_forward.1} parent=1 // pred_region
      %27 = dma.done [#allocation3], 4224
    $region17: #{split_model_forward.1} parent=1 // pred_fallthru
      _
    %v28 = vld [vmem:[%s2] sm:$0xff]
    %v29 = vld [vmem:[#allocation2] sm:$0xff]
    %v30 = vld [vmem:[#allocation2 + $0x8] sm:$0xff]
    %v31 = vld [vmem:[#allocation2 + $0x10] sm:$0xff]
    %v32 = vld [vmem:[#allocation2 + $0x18] sm:$0xff]
    %v33 = vld [vmem:[#allocation2 + $0x20] sm:$0xff]
    %v34 = vld [vmem:[#allocation2 + $0x28] sm:$0xff]
    %v35 = vld [vmem:[#allocation2 + $0x30] sm:$0xff]
    %v36 = vld [vmem:[#allocation2 + $0x38] sm:$0xff]
    %v37 = vld [vmem:[#allocation2 + $0x40] sm:$0xff]
    %v38 = vld [vmem:[#allocation2 + $0x48] sm:$0xff]
    %v39 = vld [vmem:[#allocation2 + $0x50] sm:$0xff]
    %v40 = vld [vmem:[#allocation2 + $0x58] sm:$0xff]
    %v41 = vld [vmem:[#allocation2 + $0x60] sm:$0xff]
    %v42 = vld [vmem:[#allocation2 + $0x68] sm:$0xff]
    %v43 = vld [vmem:[#allocation2 + $0x70] sm:$0xff]
    %v44 = vld [vmem:[#allocation2 + $0x78] sm:$0xff]
    %v45 = vld [vmem:[#allocation2 + $0x80] sm:$0xff]
    %v46 = vld [vmem:[#allocation2 + $0x88] sm:$0xff]
    %v47 = vld [vmem:[#allocation2 + $0x90] sm:$0xff]
    %v48 = vld [vmem:[#allocation2 + $0x98] sm:$0xff]
    %v49 = vld [vmem:[#allocation2 + $0xa0] sm:$0xff]
    %v50 = vld [vmem:[#allocation2 + $0xa8] sm:$0xff]
    %v51 = vld [vmem:[#allocation2 + $0xb0] sm:$0xff]
    %v52 = vld [vmem:[#allocation2 + $0xb8] sm:$0xff]
    %v53 = vld [vmem:[#allocation2 + $0xc0] sm:$0xff]
    %v54 = vld [vmem:[#allocation2 + $0xc8] sm:$0xff]
    %v55 = vld [vmem:[#allocation2 + $0xd0] sm:$0xff]
    %v56 = vld [vmem:[#allocation2 + $0xd8] sm:$0xff]
    %v57 = vld [vmem:[#allocation2 + $0xe0] sm:$0xff]
    %v58 = vld [vmem:[#allocation2 + $0xe8] sm:$0xff]
    %v59 = vld [vmem:[#allocation2 + $0xf0] sm:$0xff]
    %v60 = vld [vmem:[#allocation2 + $0xf8] sm:$0xff]
    %v61 = vld [vmem:[#allocation2 + $0x100] sm:$0xff]
    %v62 = vld [vmem:[%s1] sm:$0x1]
    %v63 = vld [vmem:[%s1 + $0x1] sm:$0x1]
    %v64 = vld [vmem:[%s1 + $0x2] sm:$0x1]
    %v65 = vld [vmem:[%s1 + $0x3] sm:$0x1]
    %v66 = vld [vmem:[%s1 + $0x4] sm:$0x1]
    %v67 = vld [vmem:[%s1 + $0x5] sm:$0x1]
    %vm68 = vcmp.eq.f32.partialorder %v28, 1.0
    %v69 = vsel %vm68, 1, 0
    %v70 = vcvt.s32.f32 %v69
    %v71 = vlaneseq
    %v72 = vshrl.u32 %v71, 7
    %v73 = vsub.s32 0, %v72
    %v74 = vrot.slane %v62, %v73
    %vm75 = vcmask 64512
    %v77 = vsel %vm75, %v28, 0
    %79 = vmatprep.subr.mxu0 0.0
    %80 = vmatpush1.msra.mxu0 0.0
    %81 = vmatprep.subr.mxu0 0.0
    %82 = vmatpush1.msra.mxu0 0.0
    %83 = vmatprep.subr.mxu0 0.0
    %84 = vmatpush1.msra.mxu0 0.0
    %85 = vmatprep.subr.mxu0 0.0
    %86 = vmatpush1.msra.mxu0 0.0
    %87 = vmatprep.subr.mxu0 0.0
    %88 = vmatpush1.msra.mxu0 0.0
    %89 = vmatprep.subr.mxu0 0.0
    %90 = vmatpush1.msra.mxu0 0.0
    %91 = vmatprep.subr.mxu0 0.0
    %92 = vmatpush1.msra.mxu0 0.0
    %93 = vmatprep.subr.mxu0 0.0
    %94 = vmatpush1.msra.mxu0 0.0
    %95 = vmatprep.subr.mxu0 0.0
    %96 = vmatpush1.msra.mxu0 0.0
    %97 = vmatprep.subr.mxu0 0.0
    %98 = vmatpush1.msra.mxu0 0.0
    %99 = vmatprep.subr.mxu0 0.0
    %100 = vmatpush1.msra.mxu0 0.0
    %101 = vmatprep.subr.mxu0 0.0
    %102 = vmatpush1.msra.mxu0 0.0
    %103 = vmatprep.subr.mxu0 0.0
    %104 = vmatpush1.msra.mxu0 0.0
    %105 = vmatprep.subr.mxu0 0.0
    %106 = vmatpush1.msra.mxu0 0.0
    %107 = vmatprep.subr.mxu0 0.0
    %108 = vmatpush1.msra.mxu0 0.0
    %109 = vmatprep.subr.mxu0 0.0
    %110 = vmatpush1.msra.mxu0 %v29
    %111 = vmatprep.subr.mxu0 0.0
    %112 = vmatpush2.msra.mxu0 0.0
    %113 = vmatprep.subr.mxu0 0.0
    %114 = vmatpush2.msra.mxu0 0.0
    %115 = vmatprep.subr.mxu0 0.0
    %116 = vmatpush2.msra.mxu0 0.0
    %117 = vmatprep.subr.mxu0 0.0
    %118 = vmatpush2.msra.mxu0 0.0
    %119 = vmatprep.subr.mxu0 0.0
    %120 = vmatpush2.msra.mxu0 0.0
    %121 = vmatprep.subr.mxu0 0.0
    %122 = vmatpush2.msra.mxu0 0.0
    %123 = vmatprep.subr.mxu0 0.0
    %124 = vmatpush2.msra.mxu0 0.0
    %125 = vmatprep.subr.mxu0 0.0
    %126 = vmatpush2.msra.mxu0 0.0
    %127 = vmatprep.subr.mxu0 0.0
    %128 = vmatpush2.msra.mxu0 0.0
    %129 = vmatprep.subr.mxu0 0.0
    %130 = vmatpush2.msra.mxu0 0.0
    %131 = vmatprep.subr.mxu0 0.0
    %132 = vmatpush2.msra.mxu0 0.0
    %133 = vmatprep.subr.mxu0 0.0
    %134 = vmatpush2.msra.mxu0 0.0
    %135 = vmatprep.subr.mxu0 0.0
    %136 = vmatpush2.msra.mxu0 0.0
    %137 = vmatprep.subr.mxu0 0.0
    %138 = vmatpush2.msra.mxu0 0.0
    %139 = vmatprep.subr.mxu0 0.0
    %140 = vmatpush2.msra.mxu0 0.0
    %141 = vmatprep.subr.mxu0 0.0
    %142 = vmatpush2.msra.mxu0 0.0
    %143 = vmatprep.mubr.f32.mxu0 0.0
    %144 = vmatmul.mubr.f32.gmra.mxu0 %v77
    %v145 = vpop.f32.mrf.mxu0
    %v146 = vadd.f32 %v74, %v145
    %v147 = vpop.f32.mrf.mxu0
    %148 = vdwg.mxu0
    %v149 = vmax.f32 %v146, 0.0
    %v150 = vlaneseq
    %v151 = vshrl.u32 %v150, 7
    %v152 = vsub.s32 0, %v151
    %v153 = vrot.slane %v63, %v152
    %154 = vmatprep.subr.mxu0 0.0
    %155 = vmatpush1.msra.mxu0 %v45
    %156 = vmatprep.subr.mxu0 0.0
    %157 = vmatpush1.msra.mxu0 %v44
    %158 = vmatprep.subr.mxu0 0.0
    %159 = vmatpush1.msra.mxu0 %v43
    %160 = vmatprep.subr.mxu0 0.0
    %161 = vmatpush1.msra.mxu0 %v42
    %162 = vmatprep.subr.mxu0 0.0
    %163 = vmatpush1.msra.mxu0 %v41
    %164 = vmatprep.subr.mxu0 0.0
    %165 = vmatpush1.msra.mxu0 %v40
    %166 = vmatprep.subr.mxu0 0.0
    %167 = vmatpush1.msra.mxu0 %v39
    %168 = vmatprep.subr.mxu0 0.0
    %169 = vmatpush1.msra.mxu0 %v38
    %170 = vmatprep.subr.mxu0 0.0
    %171 = vmatpush1.msra.mxu0 %v37
    %172 = vmatprep.subr.mxu0 0.0
    %173 = vmatpush1.msra.mxu0 %v36
    %174 = vmatprep.subr.mxu0 0.0
    %175 = vmatpush1.msra.mxu0 %v35
    %176 = vmatprep.subr.mxu0 0.0
    %177 = vmatpush1.msra.mxu0 %v34
    %178 = vmatprep.subr.mxu0 0.0
    %179 = vmatpush1.msra.mxu0 %v33
    %180 = vmatprep.subr.mxu0 0.0
    %181 = vmatpush1.msra.mxu0 %v32
    %182 = vmatprep.subr.mxu0 0.0
    %183 = vmatpush1.msra.mxu0 %v31
    %184 = vmatprep.subr.mxu0 0.0
    %185 = vmatpush1.msra.mxu0 %v30
    %186 = vmatprep.subr.mxu0 0.0
    %187 = vmatpush2.msra.mxu0 0.0
    %188 = vmatprep.subr.mxu0 0.0
    %189 = vmatpush2.msra.mxu0 0.0
    %190 = vmatprep.subr.mxu0 0.0
    %191 = vmatpush2.msra.mxu0 0.0
    %192 = vmatprep.subr.mxu0 0.0
    %193 = vmatpush2.msra.mxu0 0.0
    %194 = vmatprep.subr.mxu0 0.0
    %195 = vmatpush2.msra.mxu0 0.0
    %196 = vmatprep.subr.mxu0 0.0
    %197 = vmatpush2.msra.mxu0 0.0
    %198 = vmatprep.subr.mxu0 0.0
    %199 = vmatpush2.msra.mxu0 0.0
    %200 = vmatprep.subr.mxu0 0.0
    %201 = vmatpush2.msra.mxu0 0.0
    %202 = vmatprep.subr.mxu0 0.0
    %203 = vmatpush2.msra.mxu0 0.0
    %204 = vmatprep.subr.mxu0 0.0
    %205 = vmatpush2.msra.mxu0 0.0
    %206 = vmatprep.subr.mxu0 0.0
    %207 = vmatpush2.msra.mxu0 0.0
    %208 = vmatprep.subr.mxu0 0.0
    %209 = vmatpush2.msra.mxu0 0.0
    %210 = vmatprep.subr.mxu0 0.0
    %211 = vmatpush2.msra.mxu0 0.0
    %212 = vmatprep.subr.mxu0 0.0
    %213 = vmatpush2.msra.mxu0 0.0
    %214 = vmatprep.subr.mxu0 0.0
    %215 = vmatpush2.msra.mxu0 0.0
    %216 = vmatprep.subr.mxu0 0.0
    %217 = vmatpush2.msra.mxu0 0.0
    %218 = vmatprep.mubr.f32.mxu0 0.0
    %219 = vmatmul.mubr.f32.gmra.mxu0 %v149
    %v220 = vpop.f32.mrf.mxu0
    %v221 = vadd.f32 %v153, %v220
    %v222 = vpop.f32.mrf.mxu0
    %223 = vdwg.mxu0
    %v224 = vmax.f32 %v221, 0.0
    %226 = vset.pattern.permute.xlu0 7
    %227 = vperm.xlu0 %226, %v70
    %v228 = vpop.permute.xlu0 %227
    %v230 = vlaneseq
    %v231 = vshrl.u32 %v230, 7
    %v232 = vsub.s32 0, %v231
    %v233 = vrot.slane %v66, %v232
    %v234 = vmul.f32 %v228, %v233
    %v235 = vsub.f32 1.0, %v70
    %237 = vset.pattern.permute.xlu0 7
    %238 = vperm.xlu0 %237, %v235
    %v239 = vpop.permute.xlu0 %238
    %v241 = vlaneseq
    %v242 = vshrl.u32 %v241, 7
    %v243 = vsub.s32 0, %v242
    %v244 = vrot.slane %v67, %v243
    %v245 = vmul.f32 %v239, %v244
    %v246 = vadd.f32 %v234, %v245
    %v247 = vmul.f32 %v224, %v246
    %v248 = vlaneseq
    %v249 = vshrl.u32 %v248, 7
    %v250 = vsub.s32 0, %v249
    %v251 = vrot.slane %v64, %v250
    %v252 = vmul.f32 %v228, %v251
    %v253 = vlaneseq
    %v254 = vshrl.u32 %v253, 7
    %v255 = vsub.s32 0, %v254
    %v256 = vrot.slane %v65, %v255
    %v257 = vmul.f32 %v239, %v256
    %v258 = vadd.f32 %v252, %v257
    %259 = vmatprep.subr.mxu0 0.0
    %260 = vmatpush1.msra.mxu0 %v61
    %261 = vmatprep.subr.mxu0 0.0
    %262 = vmatpush1.msra.mxu0 %v60
    %263 = vmatprep.subr.mxu0 0.0
    %264 = vmatpush1.msra.mxu0 %v59
    %265 = vmatprep.subr.mxu0 0.0
    %266 = vmatpush1.msra.mxu0 %v58
    %267 = vmatprep.subr.mxu0 0.0
    %268 = vmatpush1.msra.mxu0 %v57
    %269 = vmatprep.subr.mxu0 0.0
    %270 = vmatpush1.msra.mxu0 %v56
    %271 = vmatprep.subr.mxu0 0.0
    %272 = vmatpush1.msra.mxu0 %v55
    %273 = vmatprep.subr.mxu0 0.0
    %274 = vmatpush1.msra.mxu0 %v54
    %275 = vmatprep.subr.mxu0 0.0
    %276 = vmatpush1.msra.mxu0 %v53
    %277 = vmatprep.subr.mxu0 0.0
    %278 = vmatpush1.msra.mxu0 %v52
    %279 = vmatprep.subr.mxu0 0.0
    %280 = vmatpush1.msra.mxu0 %v51
    %281 = vmatprep.subr.mxu0 0.0
    %282 = vmatpush1.msra.mxu0 %v50
    %283 = vmatprep.subr.mxu0 0.0
    %284 = vmatpush1.msra.mxu0 %v49
    %285 = vmatprep.subr.mxu0 0.0
    %286 = vmatpush1.msra.mxu0 %v48
    %287 = vmatprep.subr.mxu0 0.0
    %288 = vmatpush1.msra.mxu0 %v47
    %289 = vmatprep.subr.mxu0 0.0
    %290 = vmatpush1.msra.mxu0 %v46
    %291 = vmatprep.subr.mxu0 0.0
    %292 = vmatpush2.msra.mxu0 0.0
    %293 = vmatprep.subr.mxu0 0.0
    %294 = vmatpush2.msra.mxu0 0.0
    %295 = vmatprep.subr.mxu0 0.0
    %296 = vmatpush2.msra.mxu0 0.0
    %297 = vmatprep.subr.mxu0 0.0
    %298 = vmatpush2.msra.mxu0 0.0
    %299 = vmatprep.subr.mxu0 0.0
    %300 = vmatpush2.msra.mxu0 0.0
    %301 = vmatprep.subr.mxu0 0.0
    %302 = vmatpush2.msra.mxu0 0.0
    %303 = vmatprep.subr.mxu0 0.0
    %304 = vmatpush2.msra.mxu0 0.0
    %305 = vmatprep.subr.mxu0 0.0
    %306 = vmatpush2.msra.mxu0 0.0
    %307 = vmatprep.subr.mxu0 0.0
    %308 = vmatpush2.msra.mxu0 0.0
    %309 = vmatprep.subr.mxu0 0.0
    %310 = vmatpush2.msra.mxu0 0.0
    %311 = vmatprep.subr.mxu0 0.0
    %312 = vmatpush2.msra.mxu0 0.0
    %313 = vmatprep.subr.mxu0 0.0
    %314 = vmatpush2.msra.mxu0 0.0
    %315 = vmatprep.subr.mxu0 0.0
    %316 = vmatpush2.msra.mxu0 0.0
    %317 = vmatprep.subr.mxu0 0.0
    %318 = vmatpush2.msra.mxu0 0.0
    %319 = vmatprep.subr.mxu0 0.0
    %320 = vmatpush2.msra.mxu0 0.0
    %321 = vmatprep.subr.mxu0 0.0
    %322 = vmatpush2.msra.mxu0 0.0
    %323 = vmatprep.mubr.f32.mxu0 0.0
    %324 = vmatmul.mubr.f32.gmra.mxu0 %v247
    %v325 = vpop.f32.mrf.mxu0
    %v326 = vadd.f32 %v258, %v325
    %v327 = vpop.f32.mrf.mxu0
    %328 = vdwg.mxu0
    %329 = vst [vmem:[%s3] sm:$0xff] %v326
    // Predicated region
    $region18: #{split_model_forward.1} parent=1 // pred_check
      _
    $region19: #{split_model_forward.1} parent=1 // pred_check_branch
      %331 = sbr.rel (0) target = $region21
    $region20: #{split_model_forward.1} parent=1 // pred_region
      _
    $region21: #{split_model_forward.1} parent=1 // pred_fallthru
      _
    // Predicated region
    $region22: #{split_model_forward.1} parent=1 // pred_check
      _
    $region23: #{split_model_forward.1} parent=1 // pred_check_branch
      %333 = sbr.rel (0) target = $region25
    $region24: #{split_model_forward.1} parent=1 // pred_region
      _
    $region25: #{split_model_forward.1} parent=1 // pred_fallthru
      _
    %334 = vsyncpa [#allocation3], 1

</llo_original>
